<compile_context>
chip_gen: v5e
topology: v5e:2x2
jax: 0.10.0
libtpu: 0.0.40
codegen_flags: <defaults>
</compile_context>

<pallas_src>
import functools

import jax
import jax.numpy as jnp
from jax.experimental import pallas as pl
from jax.experimental.pallas import tpu as pltpu


def _round_up(x, m):
    return (x + m - 1) // m * m


def _attn_compress_kernel(x_ref, w1_ref, b1_ref, w2_ref, mask_ref, o_ref, *, use_bf16_mxu):
    # x_ref   : (TB, S, H)  TB batch rows per grid step
    # w1_ref  : (H, H)      = W1.T  (so that x @ w1 == Linear(x))
    # b1_ref  : (1, H)
    # w2_ref  : (1, H)      = W2 (PyTorch weight layout, row vector)
    # mask_ref: (TB, S)
    # o_ref   : (TB, H)
    TB, S, H = x_ref.shape

    h = x_ref[...]                                   # (TB, S, H) f32
    h2 = h.reshape(TB * S, H)                        # collapse leading dims (layout-preserving)

    if use_bf16_mxu:
        lhs = h2.astype(jnp.bfloat16)
        w1 = w1_ref[...].astype(jnp.bfloat16)
    else:
        lhs = h2
        w1 = w1_ref[...]

    # ws1: Linear(H -> H) + tanh (f32 accumulation on the MXU, elementwise stays f32)
    a = jnp.tanh(
        jnp.dot(lhs, w1, preferred_element_type=jnp.float32) + b1_ref[...]
    )                                                # (TB*S, H) f32

    # ws2: Linear(H -> 1, no bias) as a lane-reduction (avoids an N=1 MXU pass and keeps
    # scores lane-dense in S).
    a3 = a.reshape(TB, S, H)
    scores = jnp.sum(a3 * w2_ref[...], axis=-1)      # (TB, S)

    # context mask: -10000 where mask == 0
    scores = scores + jnp.where(mask_ref[...] == 0.0, -10000.0, 0.0)

    # softmax over the sequence axis (PyTorch Softmax(dim=1) on (B, S)),
    # with deferred normalization.
    m = jnp.max(scores, axis=1, keepdims=True)       # (TB, 1)
    e = jnp.exp(scores - m)                          # (TB, S)
    denom = jnp.sum(e, axis=1, keepdims=True)        # (TB, 1)

    # weighted pooling with un-normalized weights, then one scale by 1/denom.
    pooled = jnp.sum(e[:, :, None] * h, axis=1)      # (TB, H)
    o_ref[...] = pooled * pl.reciprocal(denom, approx=False)


@functools.partial(jax.jit, static_argnames=("use_bf16_mxu",))
def attention_compression(hidden_embs, attention_mask, w1_t, b1, w2, use_bf16_mxu=False):
    """hidden_embs: (B, S, H) f32; attention_mask: (B, S); w1_t: (H, H) = W1.T;
    b1: (H,); w2: (1, H) = W2. Returns (B, H) f32."""
    B, S, H = hidden_embs.shape

    # Batch tiling: fold TB rows per grid step (TB a multiple of 8 for dense stores).
    tb_target = _round_up(max(8, 256 // max(S, 1)), 8)
    b_pad8 = _round_up(B, 8)
    TB = min(tb_target, b_pad8)
    B_pad = _round_up(B, TB)
    grid = B_pad // TB

    x = hidden_embs.astype(jnp.float32)
    mask = attention_mask.astype(jnp.float32)
    if B_pad != B:
        # Padded rows: mask all zeros -> uniform softmax over zero rows -> zero output;
        # sliced away below. No NaNs since exp(score - max) == 1 everywhere.
        x = jnp.pad(x, ((0, B_pad - B), (0, 0), (0, 0)))
        mask = jnp.pad(mask, ((0, B_pad - B), (0, 0)))

    b1_2d = b1.reshape(1, H).astype(jnp.float32)
    w2_2d = w2.reshape(1, H).astype(jnp.float32)
    w1_t = w1_t.astype(jnp.float32)

    kernel = functools.partial(_attn_compress_kernel, use_bf16_mxu=use_bf16_mxu)

    out_pad = pl.pallas_call(
        kernel,
        out_shape=jax.ShapeDtypeStruct((B_pad, H), jnp.float32),
        grid_spec=pltpu.PrefetchScalarGridSpec(
            num_scalar_prefetch=0,
            grid=(grid,),
            in_specs=[
                pl.BlockSpec((TB, S, H), lambda b: (b, 0, 0)),  # hidden_embs tile
                pl.BlockSpec((H, H), lambda b: (0, 0)),         # W1^T (grid-invariant)
                pl.BlockSpec((1, H), lambda b: (0, 0)),         # b1
                pl.BlockSpec((1, H), lambda b: (0, 0)),         # W2 row
                pl.BlockSpec((TB, S), lambda b: (b, 0)),        # mask (lane-dense in S)
            ],
            out_specs=pl.BlockSpec((TB, H), lambda b: (b, 0)),  # sublane/lane-dense output
        ),
        compiler_params=pltpu.CompilerParams(
            dimension_semantics=("parallel",),
        ),
    )(x, w1_t, b1_2d, w2_2d, mask)

    return out_pad[:B]


def _xavier_uniform(key, shape):
    # matches nn.init.xavier_uniform_ for a 2-D weight of shape (fan_out, fan_in)
    fan_out, fan_in = shape
    bound = (6.0 / (fan_in + fan_out)) ** 0.5
    return jax.random.uniform(key, shape, jnp.float32, minval=-bound, maxval=bound)


def _reference(hidden_embs, attention_mask, w1_t, b1, w2):
    a = jnp.tanh(hidden_embs @ w1_t + b1)                 # (B, S, H)
    scores = jnp.einsum("bsh,oh->bs", a, w2)              # (B, S)
    scores = scores + jnp.where(attention_mask == 0, -10000.0, 0.0)
    attn = jax.nn.softmax(scores, axis=1)                 # (B, S)
    return jnp.einsum("bs,bsh->bh", attn, hidden_embs)    # (B, H)


if __name__ == "__main__":
    B, S, H = 2, 8, 32

    key = jax.random.PRNGKey(0)
    k_x, k_w1, k_w2, k_mask = jax.random.split(key, 4)

    hidden_embs = jax.random.normal(k_x, (B, S, H), jnp.float32)

    # Deterministic parameter init mirroring AdditiveSelfAttention._init_weights:
    #   ws1.weight xavier_uniform (H, H), ws1.bias zeros, ws2.weight xavier_uniform (1, H)
    W1 = _xavier_uniform(k_w1, (H, H))       # PyTorch Linear weight (out, in)
    b1 = jnp.zeros((H,), jnp.float32)
    W2 = _xavier_uniform(k_w2, (1, H))
    w1_t = W1.T                              # (H_in, H_out)

    # attention mask: 1 = keep, 0 = padding (mask out the tail of batch 1)
    attention_mask = jnp.ones((B, S), jnp.float32)
    attention_mask = attention_mask.at[1, S // 2:].set(0.0)

    # TODO(synk): dropout from the PyTorch module is an inference no-op and is not modeled.
    out = attention_compression(hidden_embs, attention_mask, w1_t, b1, W2)
    out = jax.block_until_ready(out)

    ref = _reference(hidden_embs, attention_mask, w1_t, b1, W2)
    assert out.shape == (B, H)
    assert jnp.allclose(out, ref, atol=1e-5, rtol=1e-5), "mismatch vs pure-JAX reference"

    print("KERNEL_OK")
</pallas_src>

<mosaic_0001>
module attributes {stable_mosaic.version = 11 : i64} {
  func.func @_attn_compress_kernel(%arg0: i32, %arg1: memref<8x8x32xf32, #tpu.memory_space<vmem>>, %arg2: memref<32x32xf32, #tpu.memory_space<vmem>>, %arg3: memref<1x32xf32, #tpu.memory_space<vmem>>, %arg4: memref<1x32xf32, #tpu.memory_space<vmem>>, %arg5: memref<8x8xf32, #tpu.memory_space<vmem>>, %arg6: memref<8x32xf32, #tpu.memory_space<vmem>>) attributes {dimension_semantics = [#tpu.dimension_semantics<parallel>], iteration_bounds = array<i64: 1>, scalar_prefetch = 0 : i64, scratch_operands = 0 : i64, tpu.core_type = #tpu.core_type<tc>, window_params = [{transform_indices = @transform_0, window_bounds = array<i64: 8, 8, 32>}, {pipeline_mode = #tpu.pipeline_mode<synchronous>, transform_indices = @transform_1, window_bounds = array<i64: 32, 32>}, {pipeline_mode = #tpu.pipeline_mode<synchronous>, transform_indices = @transform_2, window_bounds = array<i64: 1, 32>}, {pipeline_mode = #tpu.pipeline_mode<synchronous>, transform_indices = @transform_3, window_bounds = array<i64: 1, 32>}, {transform_indices = @transform_4, window_bounds = array<i64: 8, 8>}, {transform_indices = @transform_5, window_bounds = array<i64: 8, 32>}]} {
    %c0 = arith.constant 0 : index
    %c0_0 = arith.constant 0 : index
    %c0_1 = arith.constant 0 : index
    %0 = vector.load %arg1[%c0, %c0_0, %c0_1] : memref<8x8x32xf32, #tpu.memory_space<vmem>>, vector<8x8x32xf32>
    %1 = vector.shape_cast %0 : vector<8x8x32xf32> to vector<64x32xf32>
    %c0_2 = arith.constant 0 : index
    %c0_3 = arith.constant 0 : index
    %2 = vector.load %arg2[%c0_2, %c0_3] : memref<32x32xf32, #tpu.memory_space<vmem>>, vector<32x32xf32>
    %cst = arith.constant dense<0.000000e+00> : vector<64x32xf32>
    %3 = tpu.matmul %1, %2, %cst {dimension_numbers = #tpu.dot_dimension_numbers<[1], [0], [0], [1], [0, 0, 1, 1], [], []>} : vector<64x32xf32>, vector<32x32xf32>, vector<64x32xf32> -> vector<64x32xf32>
    %c0_4 = arith.constant 0 : index
    %c0_5 = arith.constant 0 : index
    %4 = vector.load %arg3[%c0_4, %c0_5] : memref<1x32xf32, #tpu.memory_space<vmem>>, vector<1x32xf32>
    %5 = vector.broadcast %4 : vector<1x32xf32> to vector<64x32xf32>
    %6 = arith.addf %3, %5 : vector<64x32xf32>
    %7 = math.tanh %6 : vector<64x32xf32>
    %8 = vector.shape_cast %7 : vector<64x32xf32> to vector<8x8x32xf32>
    %c0_6 = arith.constant 0 : index
    %c0_7 = arith.constant 0 : index
    %9 = vector.load %arg4[%c0_6, %c0_7] : memref<1x32xf32, #tpu.memory_space<vmem>>, vector<1x32xf32>
    %10 = vector.shape_cast %9 : vector<1x32xf32> to vector<1x1x32xf32>
    %11 = vector.broadcast %10 : vector<1x1x32xf32> to vector<8x8x32xf32>
    %12 = arith.mulf %8, %11 : vector<8x8x32xf32>
    %cst_8 = arith.constant dense<0.000000e+00> : vector<8x8xf32>
    %13 = vector.multi_reduction <add>, %12, %cst_8 [2] : vector<8x8x32xf32> to vector<8x8xf32>
    %c0_9 = arith.constant 0 : index
    %c0_10 = arith.constant 0 : index
    %14 = vector.load %arg5[%c0_9, %c0_10] : memref<8x8xf32, #tpu.memory_space<vmem>>, vector<8x8xf32>
    %cst_11 = arith.constant 0.000000e+00 : f32
    %15 = vector.broadcast %cst_11 : f32 to vector<8x8xf32>
    %16 = arith.cmpf oeq, %14, %15 : vector<8x8xf32>
    %cst_12 = arith.constant -1.000000e+04 : f32
    %cst_13 = arith.constant 0.000000e+00 : f32
    %17 = vector.broadcast %cst_12 : f32 to vector<8x8xf32>
    %18 = vector.broadcast %cst_13 : f32 to vector<8x8xf32>
    %19 = arith.select %16, %17, %18 : vector<8x8xi1>, vector<8x8xf32>
    %20 = arith.addf %13, %19 : vector<8x8xf32>
    %cst_14 = arith.constant dense<0xFF800000> : vector<8xf32>
    %21 = vector.multi_reduction <maximumf>, %20, %cst_14 [1] : vector<8x8xf32> to vector<8xf32>
    %22 = vector.shape_cast %21 : vector<8xf32> to vector<8x1xf32>
    %23 = vector.broadcast %22 : vector<8x1xf32> to vector<8x8xf32>
    %24 = arith.subf %20, %23 : vector<8x8xf32>
    %25 = math.exp %24 : vector<8x8xf32>
    %cst_15 = arith.constant dense<0.000000e+00> : vector<8xf32>
    %26 = vector.multi_reduction <add>, %25, %cst_15 [1] : vector<8x8xf32> to vector<8xf32>
    %27 = vector.shape_cast %26 : vector<8xf32> to vector<8x1xf32>
    %28 = vector.shape_cast %25 : vector<8x8xf32> to vector<8x8x1xf32>
    %29 = vector.broadcast %28 : vector<8x8x1xf32> to vector<8x8x32xf32>
    %30 = arith.mulf %29, %0 : vector<8x8x32xf32>
    %cst_16 = arith.constant dense<0.000000e+00> : vector<8x32xf32>
    %31 = vector.multi_reduction <add>, %30, %cst_16 [1] : vector<8x8x32xf32> to vector<8x32xf32>
    %32 = tpu.reciprocal %27 : vector<8x1xf32> -> vector<8x1xf32>
    %33 = vector.broadcast %32 : vector<8x1xf32> to vector<8x32xf32>
    %34 = arith.mulf %31, %33 : vector<8x32xf32>
    %c0_17 = arith.constant 0 : index
    %c0_18 = arith.constant 0 : index
    %35 = vector.load %arg6[%c0_17, %c0_18] : memref<8x32xf32, #tpu.memory_space<vmem>>, vector<8x32xf32>
    tpu.vector_store %arg6[%c0_17, %c0_18], %34 {strides = array<i32>} : memref<8x32xf32, #tpu.memory_space<vmem>>, vector<8x32xf32>,
    return
  }
  func.func @transform_0(%arg0: i32) -> (i32, i32, i32) {
    %c0_i32 = arith.constant 0 : i32
    %c0_i32_0 = arith.constant 0 : i32
    %c0_i32_1 = arith.constant 0 : i32
    return %arg0, %c0_i32, %c0_i32_0 : i32, i32, i32
  }
  func.func @transform_1(%arg0: i32) -> (i32, i32) {
    %c0_i32 = arith.constant 0 : i32
    %c0_i32_0 = arith.constant 0 : i32
    %c0_i32_1 = arith.constant 0 : i32
    return %c0_i32, %c0_i32_0 : i32, i32
  }
  func.func @transform_2(%arg0: i32) -> (i32, i32) {
    %c0_i32 = arith.constant 0 : i32
    %c0_i32_0 = arith.constant 0 : i32
    %c0_i32_1 = arith.constant 0 : i32
    return %c0_i32, %c0_i32_0 : i32, i32
  }
  func.func @transform_3(%arg0: i32) -> (i32, i32) {
    %c0_i32 = arith.constant 0 : i32
    %c0_i32_0 = arith.constant 0 : i32
    %c0_i32_1 = arith.constant 0 : i32
    return %c0_i32, %c0_i32_0 : i32, i32
  }
  func.func @transform_4(%arg0: i32) -> (i32, i32) {
    %c0_i32 = arith.constant 0 : i32
    %c0_i32_0 = arith.constant 0 : i32
    return %arg0, %c0_i32 : i32, i32
  }
  func.func @transform_5(%arg0: i32) -> (i32, i32) {
    %c0_i32 = arith.constant 0 : i32
    %c0_i32_0 = arith.constant 0 : i32
    return %arg0, %c0_i32 : i32, i32
  }
}

</mosaic_0001>

<llo_original>
// kernel: attention_compression.1
$region0: #{attention_compression.1}
  #allocation0 [shape = 'u32[]', space=smem, size = 0x4, offset = 0x4, fixed_abs, tag = 'smem constant byte address 0x4 - core index']
  #allocation1 [shape = 'u32[72,128]{1,0:T(1,128)}', space=vmem, size = 0x9000, scoped, tag = 'internal scratch']
  %s0 = inlined_call_operand.vmem [shape: f32[8,8,32], index: 0, kind: input, shape index: {}]
  %s1 = inlined_call_operand.vmem [shape: f32[32,32], index: 1, kind: input, shape index: {}]
  %s2 = inlined_call_operand.vmem [shape: f32[1,32], index: 2, kind: input, shape index: {}]
  %s3 = inlined_call_operand.vmem [shape: f32[1,32], index: 3, kind: input, shape index: {}]
  %s4 = inlined_call_operand.vmem [shape: f32[8,8], index: 4, kind: input, shape index: {}]
  %s5 = inlined_call_operand.vmem [shape: f32[8,32], index: 5, kind: output, shape index: {}]
  %s6 = sld [smem:[#allocation0]]
  $region30: #{attention_compression.1} parent=0
    _
  %s8 = ssub.s32 1, %s6
  %s9 = scalar_select 0, %s8, %s6
  // Predicated region
  $region2: #{attention_compression.1} parent=0 // pred_check
    _
  $region3: #{attention_compression.1} parent=0 // pred_check_branch
    %11 = sbr.rel (0) target = $region5
  $region4: #{attention_compression.1} parent=0 // pred_region
    _
  $region5: #{attention_compression.1} parent=0 // pred_fallthru
    _
  // Predicated region
  $region6: #{attention_compression.1} parent=0 // pred_check
    _
  $region7: #{attention_compression.1} parent=0 // pred_check_branch
    %13 = sbr.rel (0) target = $region9
  $region8: #{attention_compression.1} parent=0 // pred_region
    _
  $region9: #{attention_compression.1} parent=0 // pred_fallthru
    _
  // Predicated region
  $region10: #{attention_compression.1} parent=0 // pred_check
    _
  $region11: #{attention_compression.1} parent=0 // pred_check_branch
    %15 = sbr.rel (0) target = $region13
  $region12: #{attention_compression.1} parent=0 // pred_region
    _
  $region13: #{attention_compression.1} parent=0 // pred_fallthru
    _
  // Predicated region
  $region14: #{attention_compression.1} parent=0 // pred_check
    _
  $region15: #{attention_compression.1} parent=0 // pred_check_branch
    %17 = sbr.rel (0) target = $region17
  $region16: #{attention_compression.1} parent=0 // pred_region
    _
  $region17: #{attention_compression.1} parent=0 // pred_fallthru
    _
  // Predicated region
  $region18: #{attention_compression.1} parent=0 // pred_check
    _
  $region19: #{attention_compression.1} parent=0 // pred_check_branch
    %19 = sbr.rel (0) target = $region21
  $region20: #{attention_compression.1} parent=0 // pred_region
    _
  $region21: #{attention_compression.1} parent=0 // pred_fallthru
    _
  %v20 = vld [vmem:[%s0] sm:$0xff]
  %v21 = vld [vmem:[%s0 + $0x8] sm:$0xff]
  %v22 = vld [vmem:[%s0 + $0x10] sm:$0xff]
  %v23 = vld [vmem:[%s0 + $0x18] sm:$0xff]
  %v24 = vld [vmem:[%s0 + $0x20] sm:$0xff]
  %v25 = vld [vmem:[%s0 + $0x28] sm:$0xff]
  %v26 = vld [vmem:[%s0 + $0x30] sm:$0xff]
  %v27 = vld [vmem:[%s0 + $0x38] sm:$0xff]
  %v28 = vld [vmem:[%s1] sm:$0xff]
  %v29 = vld [vmem:[%s1 + $0x8] sm:$0xff]
  %v30 = vld [vmem:[%s1 + $0x10] sm:$0xff]
  %v31 = vld [vmem:[%s1 + $0x18] sm:$0xff]
  %v32 = vld [vmem:[%s2] sm:$0x1]
  %v34 = vperm.slane %v32, 0
  %vm36 = vcmask 261120
  %v38 = vsel %vm36, %v20, 0
  %v41 = vsel %vm36, %v21, 0
  %v44 = vsel %vm36, %v22, 0
  %v47 = vsel %vm36, %v23, 0
  %v50 = vsel %vm36, %v24, 0
  %v53 = vsel %vm36, %v25, 0
  %v56 = vsel %vm36, %v26, 0
  %v59 = vsel %vm36, %v27, 0
  %61 = vmatpush.msra.mxu0 0.0
  %62 = vmatpush.msra.mxu0 0.0
  %63 = vmatpush.msra.mxu0 0.0
  %64 = vmatpush.msra.mxu0 0.0
  %65 = vmatpush.msra.mxu0 0.0
  %66 = vmatpush.msra.mxu0 0.0
  %67 = vmatpush.msra.mxu0 0.0
  %68 = vmatpush.msra.mxu0 0.0
  %69 = vmatpush.msra.mxu0 0.0
  %70 = vmatpush.msra.mxu0 0.0
  %71 = vmatpush.msra.mxu0 0.0
  %72 = vmatpush.msra.mxu0 0.0
  %73 = vmatpush.msra.mxu0 %v31
  %74 = vmatpush.msra.mxu0 %v30
  %75 = vmatpush.msra.mxu0 %v29
  %76 = vmatpush.msra.mxu0 %v28
  %77 = vmatmul.f32.gmra.mxu0 %v38
  %v78 = vpop.f32.mrf.mxu0
  %v79 = vadd.f32 %v34, %v78
  %80 = vmatmul.f32.gmra.mxu0 %v41
  %v81 = vpop.f32.mrf.mxu0
  %v82 = vadd.f32 %v34, %v81
  %83 = vmatmul.f32.gmra.mxu0 %v44
  %v84 = vpop.f32.mrf.mxu0
  %v85 = vadd.f32 %v34, %v84
  %86 = vmatmul.f32.gmra.mxu0 %v47
  %v87 = vpop.f32.mrf.mxu0
  %v88 = vadd.f32 %v34, %v87
  %89 = vmatmul.f32.gmra.mxu0 %v50
  %v90 = vpop.f32.mrf.mxu0
  %v91 = vadd.f32 %v34, %v90
  %92 = vmatmul.f32.gmra.mxu0 %v53
  %v93 = vpop.f32.mrf.mxu0
  %v94 = vadd.f32 %v34, %v93
  %95 = vmatmul.f32.gmra.mxu0 %v56
  %v96 = vpop.f32.mrf.mxu0
  %v97 = vadd.f32 %v34, %v96
  %98 = vmatmul.f32.gmra.mxu0 %v59
  %v99 = vpop.f32.mrf.mxu0
  %v100 = vadd.f32 %v34, %v99
  %101 = vdwg.mxu0
  %v102 = vtanh.pop %v79
  %v103 = vtanh.pop %v82
  %v104 = vtanh.pop %v85
  %v105 = vtanh.pop %v88
  %v106 = vtanh.pop %v91
  %v107 = vtanh.pop %v94
  %v108 = vtanh.pop %v97
  %v109 = vtanh.pop %v100
  %v110 = vld [vmem:[%s3] sm:$0x1]
  %v112 = vperm.slane %v110, 0
  %v114 = vmul.f32 %v102, %v112
  %v115 = vmul.f32 %v103, %v112
  %v116 = vmul.f32 %v104, %v112
  %v117 = vmul.f32 %v105, %v112
  %v118 = vmul.f32 %v106, %v112
  %v119 = vmul.f32 %v107, %v112
  %v120 = vmul.f32 %v108, %v112
  %v121 = vmul.f32 %v109, %v112
  %v122 = vsel %vm36, %v114, 0.0
  %123 = vadd.xlane.f32.xlu0 %v122
  %v124 = vpop.xlane.xlu0 %123
  %v125 = vsel %vm36, %v115, 0.0
  %126 = vadd.xlane.f32.xlu0 %v125
  %v127 = vpop.xlane.xlu0 %126
  %v128 = vsel %vm36, %v116, 0.0
  %129 = vadd.xlane.f32.xlu0 %v128
  %v130 = vpop.xlane.xlu0 %129
  %v131 = vsel %vm36, %v117, 0.0
  %132 = vadd.xlane.f32.xlu0 %v131
  %v133 = vpop.xlane.xlu0 %132
  %v134 = vsel %vm36, %v118, 0.0
  %135 = vadd.xlane.f32.xlu0 %v134
  %v136 = vpop.xlane.xlu0 %135
  %v137 = vsel %vm36, %v119, 0.0
  %138 = vadd.xlane.f32.xlu0 %v137
  %v139 = vpop.xlane.xlu0 %138
  %v140 = vsel %vm36, %v120, 0.0
  %141 = vadd.xlane.f32.xlu0 %v140
  %v142 = vpop.xlane.xlu0 %141
  %v143 = vsel %vm36, %v121, 0.0
  %144 = vadd.xlane.f32.xlu0 %v143
  %v145 = vpop.xlane.xlu0 %144
  %v146 = vld [vmem:[%s4] sm:$0xff]
  %vm147 = vcmp.eq.f32.partialorder %v146, 0.0
  %v148 = vsel %vm147, -10000.0, 0.0
  %v150 = vperm.slane %v148, 0
  %v151 = vlaneseq
  %v152 = vshrl.u32 %v151, 7
  %154 = vset.pattern.permute.xlu0 %v152
  %155 = vperm.xlu0 %154, %v150
  %v156 = vpop.permute.xlu0 %155
  %v157 = vperm.slane %v148, 1
  %v158 = vlaneseq
  %v159 = vshrl.u32 %v158, 7
  %161 = vset.pattern.permute.xlu0 %v159
  %162 = vperm.xlu0 %161, %v157
  %v163 = vpop.permute.xlu0 %162
  %v164 = vperm.slane %v148, 2
  %v165 = vlaneseq
  %v166 = vshrl.u32 %v165, 7
  %168 = vset.pattern.permute.xlu0 %v166
  %169 = vperm.xlu0 %168, %v164
  %v170 = vpop.permute.xlu0 %169
  %v171 = vperm.slane %v148, 3
  %v172 = vlaneseq
  %v173 = vshrl.u32 %v172, 7
  %175 = vset.pattern.permute.xlu0 %v173
  %176 = vperm.xlu0 %175, %v171
  %v177 = vpop.permute.xlu0 %176
  %v178 = vperm.slane %v148, 4
  %v179 = vlaneseq
  %v180 = vshrl.u32 %v179, 7
  %182 = vset.pattern.permute.xlu0 %v180
  %183 = vperm.xlu0 %182, %v178
  %v184 = vpop.permute.xlu0 %183
  %v185 = vperm.slane %v148, 5
  %v186 = vlaneseq
  %v187 = vshrl.u32 %v186, 7
  %189 = vset.pattern.permute.xlu0 %v187
  %190 = vperm.xlu0 %189, %v185
  %v191 = vpop.permute.xlu0 %190
  %v192 = vperm.slane %v148, 6
  %v193 = vlaneseq
  %v194 = vshrl.u32 %v193, 7
  %196 = vset.pattern.permute.xlu0 %v194
  %197 = vperm.xlu0 %196, %v192
  %v198 = vpop.permute.xlu0 %197
  %v199 = vperm.slane %v148, 7
  %v200 = vlaneseq
  %v201 = vshrl.u32 %v200, 7
  %203 = vset.pattern.permute.xlu0 %v201
  %204 = vperm.xlu0 %203, %v199
  %v205 = vpop.permute.xlu0 %204
  %v214 = vadd.f32 %v124, %v156
  %v215 = vadd.f32 %v127, %v163
  %v216 = vadd.f32 %v130, %v170
  %v217 = vadd.f32 %v133, %v177
  %v218 = vadd.f32 %v136, %v184
  %v219 = vadd.f32 %v139, %v191
  %v220 = vadd.f32 %v142, %v198
  %v221 = vadd.f32 %v145, %v205
  %230 = vset.pattern.permute.xlu0 0
  %231 = vperm.xlu0 %230, %v214
  %v232 = vpop.permute.xlu0 %231
  %233 = vset.pattern.permute.xlu0 0
  %234 = vperm.xlu0 %233, %v215
  %v235 = vpop.permute.xlu0 %234
  %236 = vset.pattern.permute.xlu0 0
  %237 = vperm.xlu0 %236, %v216
  %v238 = vpop.permute.xlu0 %237
  %239 = vset.pattern.permute.xlu0 0
  %240 = vperm.xlu0 %239, %v217
  %v241 = vpop.permute.xlu0 %240
  %242 = vset.pattern.permute.xlu0 0
  %243 = vperm.xlu0 %242, %v218
  %v244 = vpop.permute.xlu0 %243
  %245 = vset.pattern.permute.xlu0 0
  %246 = vperm.xlu0 %245, %v219
  %v247 = vpop.permute.xlu0 %246
  %248 = vset.pattern.permute.xlu0 0
  %249 = vperm.xlu0 %248, %v220
  %v250 = vpop.permute.xlu0 %249
  %251 = vset.pattern.permute.xlu0 0
  %252 = vperm.xlu0 %251, %v221
  %v253 = vpop.permute.xlu0 %252
  %v254 = vlaneseq
  %v255 = vand.u32 %v254, 127
  %v256 = vperm.slane %v232, %v255
  %v257 = vperm.slane %v235, %v255
  %v258 = vperm.slane %v238, %v255
  %v259 = vperm.slane %v241, %v255
  %v260 = vperm.slane %v244, %v255
  %v261 = vperm.slane %v247, %v255
  %v262 = vperm.slane %v250, %v255
  %v263 = vperm.slane %v253, %v255
  %vm264 = vcmask 1041409
  %v265 = vsel %vm264, %v257, %v256
  %vm266 = vcmask 1042434
  %v267 = vsel %vm266, %v258, %v265
  %vm268 = vcmask 1043459
  %v269 = vsel %vm268, %v259, %v267
  %vm270 = vcmask 1044484
  %v271 = vsel %vm270, %v260, %v269
  %vm272 = vcmask 1045509
  %v273 = vsel %vm272, %v261, %v271
  %vm274 = vcmask 1046534
  %v275 = vsel %vm274, %v262, %v273
  %vm276 = vcmask 1047559
  %v277 = vsel %vm276, %v263, %v275
  %vm279 = vcmask 64512
  %v280 = vsel %vm279, %v277, -inf
  %281 = vmax.xlane.f32.xlu0 %v280
  %v282 = vpop.xlane.xlu0 %281
  %v284 = vperm.slane %v282, 0
  %v285 = vperm.slane %v282, 1
  %v286 = vperm.slane %v282, 2
  %v287 = vperm.slane %v282, 3
  %v288 = vperm.slane %v282, 4
  %v289 = vperm.slane %v282, 5
  %v290 = vperm.slane %v282, 6
  %v291 = vperm.slane %v282, 7
  %v300 = vsub.f32 %v214, %v284
  %v301 = vsub.f32 %v215, %v285
  %v302 = vsub.f32 %v216, %v286
  %v303 = vsub.f32 %v217, %v287
  %v304 = vsub.f32 %v218, %v288
  %v305 = vsub.f32 %v219, %v289
  %v306 = vsub.f32 %v220, %v290
  %v307 = vsub.f32 %v221, %v291
  %v308 = vmul.f32 %v300, 1.442695
  %v309 = vpow.pop %v308
  %v310 = vmul.f32 %v301, 1.442695
  %v311 = vpow.pop %v310
  %v312 = vmul.f32 %v302, 1.442695
  %v313 = vpow.pop %v312
  %v314 = vmul.f32 %v303, 1.442695
  %v315 = vpow.pop %v314
  %v316 = vmul.f32 %v304, 1.442695
  %v317 = vpow.pop %v316
  %v318 = vmul.f32 %v305, 1.442695
  %v319 = vpow.pop %v318
  %v320 = vmul.f32 %v306, 1.442695
  %v321 = vpow.pop %v320
  %v322 = vmul.f32 %v307, 1.442695
  %v323 = vpow.pop %v322
  %332 = vset.pattern.permute.xlu0 0
  %333 = vperm.xlu0 %332, %v309
  %v334 = vpop.permute.xlu0 %333
  %335 = vset.pattern.permute.xlu0 0
  %336 = vperm.xlu0 %335, %v311
  %v337 = vpop.permute.xlu0 %336
  %338 = vset.pattern.permute.xlu0 0
  %339 = vperm.xlu0 %338, %v313
  %v340 = vpop.permute.xlu0 %339
  %341 = vset.pattern.permute.xlu0 0
  %342 = vperm.xlu0 %341, %v315
  %v343 = vpop.permute.xlu0 %342
  %344 = vset.pattern.permute.xlu0 0
  %345 = vperm.xlu0 %344, %v317
  %v346 = vpop.permute.xlu0 %345
  %347 = vset.pattern.permute.xlu0 0
  %348 = vperm.xlu0 %347, %v319
  %v349 = vpop.permute.xlu0 %348
  %350 = vset.pattern.permute.xlu0 0
  %351 = vperm.xlu0 %350, %v321
  %v352 = vpop.permute.xlu0 %351
  %353 = vset.pattern.permute.xlu0 0
  %354 = vperm.xlu0 %353, %v323
  %v355 = vpop.permute.xlu0 %354
  %v356 = vperm.slane %v334, %v255
  %v357 = vperm.slane %v337, %v255
  %v358 = vperm.slane %v340, %v255
  %v359 = vperm.slane %v343, %v255
  %v360 = vperm.slane %v346, %v255
  %v361 = vperm.slane %v349, %v255
  %v362 = vperm.slane %v352, %v255
  %v363 = vperm.slane %v355, %v255
  %v364 = vsel %vm264, %v357, %v356
  %v365 = vsel %vm266, %v358, %v364
  %v366 = vsel %vm268, %v359, %v365
  %v367 = vsel %vm270, %v360, %v366
  %v368 = vsel %vm272, %v361, %v367
  %v369 = vsel %vm274, %v362, %v368
  %v370 = vsel %vm276, %v363, %v369
  %v372 = vsel %vm279, %v370, 0.0
  %373 = vadd.xlane.f32.xlu0 %v372
  %v374 = vpop.xlane.xlu0 %373
  %v383 = vmul.f32 %v334, %v20
  %v384 = vmul.f32 %v337, %v21
  %v385 = vmul.f32 %v340, %v22
  %v386 = vmul.f32 %v343, %v23
  %v387 = vmul.f32 %v346, %v24
  %v388 = vmul.f32 %v349, %v25
  %v389 = vmul.f32 %v352, %v26
  %v390 = vmul.f32 %v355, %v27
  %v391 = vsel %vm36, %v383, 0.0
  %v392 = vrot.slane %v391, 4
  %v393 = vadd.f32 %v391, %v392
  %v394 = vrot.slane %v393, 2
  %v395 = vadd.f32 %v393, %v394
  %v396 = vrot.slane %v395, 1
  %v397 = vadd.f32 %v395, %v396
  %v398 = vsel %vm36, %v384, 0.0
  %v399 = vrot.slane %v398, 4
  %v400 = vadd.f32 %v398, %v399
  %v401 = vrot.slane %v400, 2
  %v402 = vadd.f32 %v400, %v401
  %v403 = vrot.slane %v402, 1
  %v404 = vadd.f32 %v402, %v403
  %v405 = vsel %vm36, %v385, 0.0
  %v406 = vrot.slane %v405, 4
  %v407 = vadd.f32 %v405, %v406
  %v408 = vrot.slane %v407, 2
  %v409 = vadd.f32 %v407, %v408
  %v410 = vrot.slane %v409, 1
  %v411 = vadd.f32 %v409, %v410
  %v412 = vsel %vm36, %v386, 0.0
  %v413 = vrot.slane %v412, 4
  %v414 = vadd.f32 %v412, %v413
  %v415 = vrot.slane %v414, 2
  %v416 = vadd.f32 %v414, %v415
  %v417 = vrot.slane %v416, 1
  %v418 = vadd.f32 %v416, %v417
  %v419 = vsel %vm36, %v387, 0.0
  %v420 = vrot.slane %v419, 4
  %v421 = vadd.f32 %v419, %v420
  %v422 = vrot.slane %v421, 2
  %v423 = vadd.f32 %v421, %v422
  %v424 = vrot.slane %v423, 1
  %v425 = vadd.f32 %v423, %v424
  %v426 = vsel %vm36, %v388, 0.0
  %v427 = vrot.slane %v426, 4
  %v428 = vadd.f32 %v426, %v427
  %v429 = vrot.slane %v428, 2
  %v430 = vadd.f32 %v428, %v429
  %v431 = vrot.slane %v430, 1
  %v432 = vadd.f32 %v430, %v431
  %v433 = vsel %vm36, %v389, 0.0
  %v434 = vrot.slane %v433, 4
  %v435 = vadd.f32 %v433, %v434
  %v436 = vrot.slane %v435, 2
  %v437 = vadd.f32 %v435, %v436
  %v438 = vrot.slane %v437, 1
  %v439 = vadd.f32 %v437, %v438
  %v440 = vsel %vm36, %v390, 0.0
  %v441 = vrot.slane %v440, 4
  %v442 = vadd.f32 %v440, %v441
  %v443 = vrot.slane %v442, 2
  %v444 = vadd.f32 %v442, %v443
  %v445 = vrot.slane %v444, 1
  %v446 = vadd.f32 %v444, %v445
  %v447 = vrcp.pop %v374
  %v448 = vmul.f32 %v374, %v447
  %v449 = vsub.f32 1.0, %v448
  %v450 = vmul.f32 %v447, %v449
  %v451 = vadd.f32 %v447, %v450
  %vm452 = vweird.f32 %v374
  %vm453 = vweird.f32 %v447
  %vm454 = vmor %vm452, %vm453
  %v455 = vsel %vm454, %v447, %v451
  %v456 = vand.u32 2147483647, %v374
  %vm457 = vcmp.eq.f32.partialorder %v456, 8.507059e+37
  %v458 = vand.u32 %v374, 2147483648
  %v459 = vor.u32 1.1754944e-38, %v458
  %v460 = vsel %vm457, %v459, %v455
  %v462 = vrot.slane %v460, 1
  %v463 = vrot.slane %v460, 2
  %v464 = vrot.slane %v460, 3
  %v465 = vrot.slane %v460, 4
  %v466 = vrot.slane %v460, 5
  %v467 = vrot.slane %v460, 6
  %v468 = vrot.slane %v460, 7
  %v477 = vmul.f32 %v397, %v460
  %v478 = vmul.f32 %v404, %v462
  %v479 = vmul.f32 %v411, %v463
  %v480 = vmul.f32 %v418, %v464
  %v481 = vmul.f32 %v425, %v465
  %v482 = vmul.f32 %v432, %v466
  %v483 = vmul.f32 %v439, %v467
  %v484 = vmul.f32 %v446, %v468
  %v493 = vrot.slane %v478, 7
  %v494 = vsel %vm264, %v493, %v477
  %v495 = vrot.slane %v479, 6
  %v496 = vsel %vm266, %v495, %v494
  %v497 = vrot.slane %v480, 5
  %v498 = vsel %vm268, %v497, %v496
  %v499 = vrot.slane %v481, 4
  %v500 = vsel %vm270, %v499, %v498
  %v501 = vrot.slane %v482, 3
  %v502 = vsel %vm272, %v501, %v500
  %v503 = vrot.slane %v483, 2
  %v504 = vsel %vm274, %v503, %v502
  %v505 = vrot.slane %v484, 1
  %v506 = vsel %vm276, %v505, %v504
  %508 = vst.msk [vmem:[%s5] sm:$0xff] %vm36, %v506
  // Predicated region
  $region22: #{attention_compression.1} parent=0 // pred_check
    _
  $region23: #{attention_compression.1} parent=0 // pred_check_branch
    %510 = sbr.rel (0) target = $region25
  $region24: #{attention_compression.1} parent=0 // pred_region
    _
  $region25: #{attention_compression.1} parent=0 // pred_fallthru
    _
  // Predicated region
  $region26: #{attention_compression.1} parent=0 // pred_check
    _
  $region27: #{attention_compression.1} parent=0 // pred_check_branch
    %512 = sbr.rel (0) target = $region29
  $region28: #{attention_compression.1} parent=0 // pred_region
    _
  $region29: #{attention_compression.1} parent=0 // pred_fallthru
    _

</llo_original>
